<compile_context>
chip_gen: v5e
topology: v5e:2x2
jax: 0.10.0
libtpu: 0.0.40
codegen_flags: <defaults>
</compile_context>

<pallas_src>
import functools
import math

import jax
import jax.numpy as jnp
import numpy as np
from jax.experimental import pallas as pl
from jax.experimental.pallas import tpu as pltpu


def _round_up(x, m):
    return ((x + m - 1) // m) * m


def gin_kernel(a_ref, xk_ref, xs_ref, w1_ref, b1_ref, w2_ref, b2_ref, o_ref,
               *, one_plus_eps, tile_k, xk_resident):
    # a_ref  : (tile_n, tile_k) bf16 adjacency tile   (row-tile i, col-tile k)
    # xk_ref : bf16 neighbor-source features; either the full (Np, Dp) matrix
    #          (grid-invariant, sliced in-kernel) or a (tile_k, Dp) k-stripe.
    # xs_ref : (tile_n, Dp) f32 self features (i-indexed, exact residual path)
    # w1/b1  : (Dp, Hp), (1, Hp) f32 ; w2/b2 : (Hp, Dp), (1, Dp) f32
    # o_ref  : (tile_n, Dp) f32 output tile, resident across the k axis; used
    #          directly as the neighbor-sum accumulator (no extra scratch).
    k = pl.program_id(1)

    @pl.when(k == 0)
    def _():
        o_ref[...] = jnp.zeros_like(o_ref)

    if xk_resident:
        start = pl.multiple_of(k * tile_k, tile_k)
        xk = xk_ref[pl.ds(start, tile_k), :]
    else:
        xk = xk_ref[...]

    # Partial neighbor aggregation: bf16 x bf16 MXU matmul, exact f32 accumulate.
    o_ref[...] += jnp.dot(a_ref[...], xk, preferred_element_type=jnp.float32)

    @pl.when(k == pl.num_programs(1) - 1)
    def _():
        y = one_plus_eps * xs_ref[...] + o_ref[...]
        h = jnp.dot(y, w1_ref[...], preferred_element_type=jnp.float32) + b1_ref[...]
        h = jnp.maximum(h, 0.0)
        o_ref[...] = (jnp.dot(h, w2_ref[...], preferred_element_type=jnp.float32)
                      + b2_ref[...])


def gin_conv(x, edge_index, params, eps=0.0, tile_n=256, tile_k=512,
             resident_x_budget_bytes=8 * 1024 * 1024,
             vmem_limit_bytes=48 * 1024 * 1024):
    """x: [N, D] f32 node features; edge_index: [2, E] int32 (row, col)."""
    N, D = x.shape
    w1, b1, w2, b2 = params
    H = w1.shape[1]

    # Lane-dense padding of D/H; clamp tiles to the padded node count so small
    # graphs don't over-pad, then pad N so both grid axes divide it.
    Dp = _round_up(D, 128)
    Hp = _round_up(H, 128)
    N128 = _round_up(N, 128)
    tile_n = min(tile_n, N128)
    tile_k = min(tile_k, N128)
    Np = _round_up(N, math.lcm(tile_n, tile_k))

    # remove_self_loops + scatter_add expressed as a dense adjacency built
    # directly in bf16 (exact for edge multiplicities up to 256; no f32 temp).
    row, col = edge_index[0], edge_index[1]
    keep = (row != col).astype(jnp.bfloat16)
    A = jnp.zeros((Np, Np), dtype=jnp.bfloat16).at[row, col].add(keep)

    xf32 = jnp.zeros((Np, Dp), dtype=jnp.float32).at[:N, :D].set(
        x.astype(jnp.float32))
    xbf16 = xf32.astype(jnp.bfloat16)          # neighbor-source stream (halved HBM)
    w1p = jnp.zeros((Dp, Hp), jnp.float32).at[:D, :H].set(w1)
    b1p = jnp.zeros((1, Hp), jnp.float32).at[0, :H].set(b1)
    w2p = jnp.zeros((Hp, Dp), jnp.float32).at[:H, :D].set(w2)
    b2p = jnp.zeros((1, Dp), jnp.float32).at[0, :D].set(b2)

    # Hold the whole bf16 x resident in VMEM when it fits the budget; otherwise
    # stream k-stripes (re-read once per row tile).
    xk_resident = (Np * Dp * 2) <= resident_x_budget_bytes
    if xk_resident:
        xk_spec = pl.BlockSpec((Np, Dp), lambda i, k: (0, 0))
    else:
        xk_spec = pl.BlockSpec((tile_k, Dp), lambda i, k: (k, 0))

    grid = (Np // tile_n, Np // tile_k)
    kernel = functools.partial(gin_kernel, one_plus_eps=float(1.0 + eps),
                               tile_k=tile_k, xk_resident=xk_resident)

    out = pl.pallas_call(
        kernel,
        out_shape=jax.ShapeDtypeStruct((Np, Dp), jnp.float32),
        grid_spec=pltpu.PrefetchScalarGridSpec(
            num_scalar_prefetch=0,
            grid=grid,
            in_specs=[
                pl.BlockSpec((tile_n, tile_k), lambda i, k: (i, k)),   # A (bf16)
                xk_spec,                                               # x, neighbor src (bf16)
                pl.BlockSpec((tile_n, Dp), lambda i, k: (i, 0)),       # x, self/residual (f32)
                pl.BlockSpec((Dp, Hp), lambda i, k: (0, 0)),           # W1
                pl.BlockSpec((1, Hp), lambda i, k: (0, 0)),            # b1
                pl.BlockSpec((Hp, Dp), lambda i, k: (0, 0)),           # W2
                pl.BlockSpec((1, Dp), lambda i, k: (0, 0)),            # b2
            ],
            out_specs=pl.BlockSpec((tile_n, Dp), lambda i, k: (i, 0)),
        ),
        compiler_params=pltpu.CompilerParams(
            dimension_semantics=("parallel", "arbitrary"),
            vmem_limit_bytes=vmem_limit_bytes,
        ),
    )(A, xbf16, xf32, w1p, b1p, w2p, b2p)

    # Strip node/feature padding.
    return out[:N, :D].astype(x.dtype)


def _ref_gin(x, row, col, params, eps=0.0):
    """Pure numpy reference matching the PyTorch forward semantics."""
    x = np.asarray(x, dtype=np.float64)
    w1, b1, w2, b2 = [np.asarray(p, dtype=np.float64) for p in params]
    agg = np.zeros_like(x)
    for r, c in zip(np.asarray(row), np.asarray(col)):
        if r != c:                         # remove_self_loops
            agg[r] += x[c]                 # scatter_add(x[col], row)
    y = (1.0 + eps) * x + agg
    h = np.maximum(y @ w1 + b1, 0.0)
    return h @ w2 + b2


if __name__ == "__main__":
    # Small but non-trivial shapes: exercises N-padding (200 -> 256), D/H padding
    # (48/64 -> 128), tile clamping, and the resident-x in-kernel k-slicing path.
    N, D, H, E = 200, 48, 64, 600
    eps = 0.0                              # register_buffer default, train_eps=False

    key = jax.random.PRNGKey(0)
    kx, ke, k1, k2, k3, k4 = jax.random.split(key, 6)

    x = jax.random.normal(kx, (N, D), dtype=jnp.float32)
    edge_index = jax.random.randint(ke, (2, E), 0, N, dtype=jnp.int32)

    # Deterministic MLP parameters (h_Theta = Linear(D,H) -> ReLU -> Linear(H,D))
    w1 = jax.random.normal(k1, (D, H), dtype=jnp.float32) * 0.1
    b1 = jax.random.normal(k2, (H,), dtype=jnp.float32) * 0.1
    w2 = jax.random.normal(k3, (H, D), dtype=jnp.float32) * 0.1
    b2 = jax.random.normal(k4, (D,), dtype=jnp.float32) * 0.1
    params = (w1, b1, w2, b2)

    out = gin_conv(x, edge_index, params, eps=eps)
    out = jax.block_until_ready(out)

    ref = _ref_gin(x, edge_index[0], edge_index[1], params, eps=eps)
    # bf16 neighbor-source features => ~bf16-level error on the aggregation only
    # (A counts, f32 accumulation, and the (1+eps)*x residual path are exact).
    np.testing.assert_allclose(np.asarray(out), ref, rtol=2e-2, atol=2e-2)

    # TODO(synk): for very large sparse graphs, replace the dense-adjacency
    # formulation with a CSR/edge-list gather kernel (scalar-prefetch offsets);
    # dense A is O(N^2) traffic regardless of sparsity.
    print("KERNEL_OK")
</pallas_src>

<mosaic_0001>
module attributes {stable_mosaic.version = 11 : i64} {
  func.func @gin_kernel(%arg0: i32, %arg1: i32, %arg2: memref<256x256xbf16, #tpu.memory_space<vmem>>, %arg3: memref<256x128xbf16, #tpu.memory_space<vmem>>, %arg4: memref<256x128xf32, #tpu.memory_space<vmem>>, %arg5: memref<128x128xf32, #tpu.memory_space<vmem>>, %arg6: memref<1x128xf32, #tpu.memory_space<vmem>>, %arg7: memref<128x128xf32, #tpu.memory_space<vmem>>, %arg8: memref<1x128xf32, #tpu.memory_space<vmem>>, %arg9: memref<256x128xf32, #tpu.memory_space<vmem>>) attributes {dimension_semantics = [#tpu.dimension_semantics<parallel>, #tpu.dimension_semantics<arbitrary>], iteration_bounds = array<i64: 1, 1>, scalar_prefetch = 0 : i64, scratch_operands = 0 : i64, tpu.core_type = #tpu.core_type<tc>, window_params = [{transform_indices = @transform_0, window_bounds = array<i64: 256, 256>}, {pipeline_mode = #tpu.pipeline_mode<synchronous>, transform_indices = @transform_1, window_bounds = array<i64: 256, 128>}, {transform_indices = @transform_2, window_bounds = array<i64: 256, 128>}, {pipeline_mode = #tpu.pipeline_mode<synchronous>, transform_indices = @transform_3, window_bounds = array<i64: 128, 128>}, {pipeline_mode = #tpu.pipeline_mode<synchronous>, transform_indices = @transform_4, window_bounds = array<i64: 1, 128>}, {pipeline_mode = #tpu.pipeline_mode<synchronous>, transform_indices = @transform_5, window_bounds = array<i64: 128, 128>}, {pipeline_mode = #tpu.pipeline_mode<synchronous>, transform_indices = @transform_6, window_bounds = array<i64: 1, 128>}, {transform_indices = @transform_7, window_bounds = array<i64: 256, 128>}]} {
    %c0_i32 = arith.constant 0 : i32
    %0 = arith.cmpi eq, %arg1, %c0_i32 : i32
    %1 = arith.extui %0 : i1 to i32
    %c0_i32_0 = arith.constant 0 : i32
    %2 = arith.cmpi ne, %1, %c0_i32_0 : i32
    scf.if %2 {
      %cst_9 = arith.constant 0.000000e+00 : f32
      %15 = vector.broadcast %cst_9 : f32 to vector<256x128xf32>
      %c0_10 = arith.constant 0 : index
      %c0_11 = arith.constant 0 : index
      %16 = vector.load %arg9[%c0_10, %c0_11] : memref<256x128xf32, #tpu.memory_space<vmem>>, vector<256x128xf32>
      tpu.vector_store %arg9[%c0_10, %c0_11], %15 {strides = array<i32>} : memref<256x128xf32, #tpu.memory_space<vmem>>, vector<256x128xf32>,
    } else {
    }
    %c256_i32 = arith.constant 256 : i32
    %3 = arith.muli %arg1, %c256_i32 : i32
    %4 = tpu.assume_multiple %3, 256 : i32
    %5 = arith.index_cast %4 : i32 to index
    %c0 = arith.constant 0 : index
    %6 = vector.load %arg3[%5, %c0] : memref<256x128xbf16, #tpu.memory_space<vmem>>, vector<256x128xbf16>
    %c0_1 = arith.constant 0 : index
    %c0_2 = arith.constant 0 : index
    %7 = vector.load %arg9[%c0_1, %c0_2] : memref<256x128xf32, #tpu.memory_space<vmem>>, vector<256x128xf32>
    %c0_3 = arith.constant 0 : index
    %c0_4 = arith.constant 0 : index
    %8 = vector.load %arg2[%c0_3, %c0_4] : memref<256x256xbf16, #tpu.memory_space<vmem>>, vector<256x256xbf16>
    %cst = arith.constant dense<0.000000e+00> : vector<256x128xf32>
    %9 = tpu.matmul %8, %6, %cst {dimension_numbers = #tpu.dot_dimension_numbers<[1], [0], [0], [1], [0, 0, 1, 1], [], []>} : vector<256x256xbf16>, vector<256x128xbf16>, vector<256x128xf32> -> vector<256x128xf32>
    %10 = arith.addf %7, %9 : vector<256x128xf32>
    %c0_5 = arith.constant 0 : index
    %c0_6 = arith.constant 0 : index
    %11 = vector.load %arg9[%c0_5, %c0_6] : memref<256x128xf32, #tpu.memory_space<vmem>>, vector<256x128xf32>
    tpu.vector_store %arg9[%c0_5, %c0_6], %10 {strides = array<i32>} : memref<256x128xf32, #tpu.memory_space<vmem>>, vector<256x128xf32>,
    %c0_i32_7 = arith.constant 0 : i32
    %12 = arith.cmpi eq, %arg1, %c0_i32_7 : i32
    %13 = arith.extui %12 : i1 to i32
    %c0_i32_8 = arith.constant 0 : i32
    %14 = arith.cmpi ne, %13, %c0_i32_8 : i32
    scf.if %14 {
      %c0_9 = arith.constant 0 : index
      %c0_10 = arith.constant 0 : index
      %15 = vector.load %arg4[%c0_9, %c0_10] : memref<256x128xf32, #tpu.memory_space<vmem>>, vector<256x128xf32>
      %cst_11 = arith.constant 1.000000e+00 : f32
      %16 = vector.broadcast %cst_11 : f32 to vector<256x128xf32>
      %17 = arith.mulf %16, %15 : vector<256x128xf32>
      %c0_12 = arith.constant 0 : index
      %c0_13 = arith.constant 0 : index
      %18 = vector.load %arg9[%c0_12, %c0_13] : memref<256x128xf32, #tpu.memory_space<vmem>>, vector<256x128xf32>
      %19 = arith.addf %17, %18 : vector<256x128xf32>
      %c0_14 = arith.constant 0 : index
      %c0_15 = arith.constant 0 : index
      %20 = vector.load %arg5[%c0_14, %c0_15] : memref<128x128xf32, #tpu.memory_space<vmem>>, vector<128x128xf32>
      %cst_16 = arith.constant dense<0.000000e+00> : vector<256x128xf32>
      %21 = tpu.matmul %19, %20, %cst_16 {dimension_numbers = #tpu.dot_dimension_numbers<[1], [0], [0], [1], [0, 0, 1, 1], [], []>} : vector<256x128xf32>, vector<128x128xf32>, vector<256x128xf32> -> vector<256x128xf32>
      %c0_17 = arith.constant 0 : index
      %c0_18 = arith.constant 0 : index
      %22 = vector.load %arg6[%c0_17, %c0_18] : memref<1x128xf32, #tpu.memory_space<vmem>>, vector<1x128xf32>
      %23 = vector.broadcast %22 : vector<1x128xf32> to vector<256x128xf32>
      %24 = arith.addf %21, %23 : vector<256x128xf32>
      %cst_19 = arith.constant 0.000000e+00 : f32
      %25 = vector.broadcast %cst_19 : f32 to vector<256x128xf32>
      %26 = arith.maximumf %24, %25 : vector<256x128xf32>
      %c0_20 = arith.constant 0 : index
      %c0_21 = arith.constant 0 : index
      %27 = vector.load %arg7[%c0_20, %c0_21] : memref<128x128xf32, #tpu.memory_space<vmem>>, vector<128x128xf32>
      %cst_22 = arith.constant dense<0.000000e+00> : vector<256x128xf32>
      %28 = tpu.matmul %26, %27, %cst_22 {dimension_numbers = #tpu.dot_dimension_numbers<[1], [0], [0], [1], [0, 0, 1, 1], [], []>} : vector<256x128xf32>, vector<128x128xf32>, vector<256x128xf32> -> vector<256x128xf32>
      %c0_23 = arith.constant 0 : index
      %c0_24 = arith.constant 0 : index
      %29 = vector.load %arg8[%c0_23, %c0_24] : memref<1x128xf32, #tpu.memory_space<vmem>>, vector<1x128xf32>
      %30 = vector.broadcast %29 : vector<1x128xf32> to vector<256x128xf32>
      %31 = arith.addf %28, %30 : vector<256x128xf32>
      %c0_25 = arith.constant 0 : index
      %c0_26 = arith.constant 0 : index
      %32 = vector.load %arg9[%c0_25, %c0_26] : memref<256x128xf32, #tpu.memory_space<vmem>>, vector<256x128xf32>
      tpu.vector_store %arg9[%c0_25, %c0_26], %31 {strides = array<i32>} : memref<256x128xf32, #tpu.memory_space<vmem>>, vector<256x128xf32>,
    } else {
    }
    return
  }
  func.func @transform_0(%arg0: i32, %arg1: i32) -> (i32, i32) {
    %c0_i32 = arith.constant 0 : i32
    return %arg0, %arg1 : i32, i32
  }
  func.func @transform_1(%arg0: i32, %arg1: i32) -> (i32, i32) {
    %c0_i32 = arith.constant 0 : i32
    %c0_i32_0 = arith.constant 0 : i32
    %c0_i32_1 = arith.constant 0 : i32
    return %c0_i32, %c0_i32_0 : i32, i32
  }
  func.func @transform_2(%arg0: i32, %arg1: i32) -> (i32, i32) {
    %c0_i32 = arith.constant 0 : i32
    %c0_i32_0 = arith.constant 0 : i32
    return %arg0, %c0_i32 : i32, i32
  }
  func.func @transform_3(%arg0: i32, %arg1: i32) -> (i32, i32) {
    %c0_i32 = arith.constant 0 : i32
    %c0_i32_0 = arith.constant 0 : i32
    %c0_i32_1 = arith.constant 0 : i32
    return %c0_i32, %c0_i32_0 : i32, i32
  }
  func.func @transform_4(%arg0: i32, %arg1: i32) -> (i32, i32) {
    %c0_i32 = arith.constant 0 : i32
    %c0_i32_0 = arith.constant 0 : i32
    %c0_i32_1 = arith.constant 0 : i32
    return %c0_i32, %c0_i32_0 : i32, i32
  }
  func.func @transform_5(%arg0: i32, %arg1: i32) -> (i32, i32) {
    %c0_i32 = arith.constant 0 : i32
    %c0_i32_0 = arith.constant 0 : i32
    %c0_i32_1 = arith.constant 0 : i32
    return %c0_i32, %c0_i32_0 : i32, i32
  }
  func.func @transform_6(%arg0: i32, %arg1: i32) -> (i32, i32) {
    %c0_i32 = arith.constant 0 : i32
    %c0_i32_0 = arith.constant 0 : i32
    %c0_i32_1 = arith.constant 0 : i32
    return %c0_i32, %c0_i32_0 : i32, i32
  }
  func.func @transform_7(%arg0: i32, %arg1: i32) -> (i32, i32) {
    %c0_i32 = arith.constant 0 : i32
    %c0_i32_0 = arith.constant 0 : i32
    return %arg0, %c0_i32 : i32, i32
  }
}

</mosaic_0001>

<llo_original>
// kernel: tpu_custom_call.1
$region0: #{tpu_custom_call.1}
  #allocation0 [shape = 'u32[]', space=smem, size = 0x4, offset = 0x4, fixed_abs, tag = 'smem constant byte address 0x4 - core index']
  #allocation1 [shape = 'u32[72,128]{1,0:T(1,128)}', space=vmem, size = 0x9000, scoped, tag = 'internal scratch']
  %s0 = inlined_call_operand.hbm [shape: bf16[256,256], index: 0, kind: input, shape index: {}]
  %s1 = inlined_call_operand.hbm [shape: bf16[256,128], index: 1, kind: input, shape index: {}]
  %s2 = inlined_call_operand.hbm [shape: f32[256,128], index: 2, kind: input, shape index: {}]
  %s3 = inlined_call_operand.hbm [shape: f32[128,128], index: 3, kind: input, shape index: {}]
  %s4 = inlined_call_operand.vmem [shape: f32[1,128], index: 4, kind: input, shape index: {}]
  %s5 = inlined_call_operand.hbm [shape: f32[128,128], index: 5, kind: input, shape index: {}]
  %s6 = inlined_call_operand.vmem [shape: f32[1,128], index: 6, kind: input, shape index: {}]
  %s7 = inlined_call_operand.hbm [shape: f32[256,128], index: 7, kind: output, shape index: {}]
  %s8 = sld [smem:[#allocation0]]
  $region66: #{tpu_custom_call.1} parent=0
    _
  %s10 = ssub.s32 1, %s8
  %s11 = scalar_select 0, %s10, %s8
  $region1: #{tpu_custom_call.1} parent=0
    #allocation2 [shape = 'u8[131072]{0}', space=vmem, size = 0x20000, scoped, tag = 'input window, operand 0, single buffered']
    #allocation3 [shape = 's32[1]{0}', space=sflag, size = 0x4, scoped, tag = 'scoped memory for tpu_custom_call.1']
    #allocation4 [shape = 's32[1]{0}', space=sflag, size = 0x4, scoped, tag = 'scoped memory for tpu_custom_call.1']
    #allocation5 [shape = 'u8[65536]{0}', space=vmem, size = 0x10000, scoped, tag = 'input window, operand 1, single buffered']
    #allocation6 [shape = 's32[1]{0}', space=sflag, size = 0x4, scoped, tag = 'scoped memory for tpu_custom_call.1']
    #allocation7 [shape = 'u8[131072]{0}', space=vmem, size = 0x20000, scoped, tag = 'input window, operand 2, single buffered']
    #allocation8 [shape = 'u8[65536]{0}', space=vmem, size = 0x10000, scoped, tag = 'input window, operand 3, single buffered']
    #allocation9 [shape = 's32[1]{0}', space=sflag, size = 0x4, scoped, tag = 'scoped memory for tpu_custom_call.1']
    #allocation10 [shape = 'u8[65536]{0}', space=vmem, size = 0x10000, scoped, tag = 'input window, operand 5, single buffered']
    #allocation11 [shape = 'u8[131072]{0}', space=vmem, size = 0x20000, scoped, tag = 'output window, operand 0, single buffered']
    %12 = vsyncpa [#allocation3], 0
    %13 = vsyncpa [#allocation6], 0
    %14 = vsyncpa [#allocation9], 0
    %15 = vsyncpa [#allocation4], 0
    // Predicated region
    $region2: #{tpu_custom_call.1} parent=1 // pred_check
      _
    $region3: #{tpu_custom_call.1} parent=1 // pred_check_branch
      %17 = sbr.rel (0) target = $region5
    $region4: #{tpu_custom_call.1} parent=1 // pred_region
      %19 = vsyncadd [#allocation3], 0
      %s20 = sshll.u32 %s0, 4
      %s21 = int_to_ptr.hbm [resolvable:$true] %s20
      %s22 = sshll.u32 [#allocation2], 4
      %s23 = int_to_ptr.vmem [resolvable:$true] %s22
      %28 = dma.hbm_to_vmem [thread:$0]  %s21, 4096, %s23, [#allocation3], 128, 128, 8
    $region5: #{tpu_custom_call.1} parent=1 // pred_fallthru
      _
    // Predicated region
    $region6: #{tpu_custom_call.1} parent=1 // pred_check
      _
    $region7: #{tpu_custom_call.1} parent=1 // pred_check_branch
      %30 = sbr.rel (0) target = $region9
    $region8: #{tpu_custom_call.1} parent=1 // pred_region
      %32 = vsyncadd [#allocation6], 0
      %s33 = sshll.u32 %s1, 4
      %s34 = int_to_ptr.hbm [resolvable:$true] %s33
      %s35 = sshll.u32 [#allocation5], 4
      %s36 = int_to_ptr.vmem [resolvable:$true] %s35
      %41 = dma.hbm_to_vmem [thread:$0]  %s34, 2048, %s36, [#allocation6], 64, 64, 4
    $region9: #{tpu_custom_call.1} parent=1 // pred_fallthru
      _
    // Predicated region
    $region10: #{tpu_custom_call.1} parent=1 // pred_check
      _
    $region11: #{tpu_custom_call.1} parent=1 // pred_check_branch
      %43 = sbr.rel (0) target = $region13
    $region12: #{tpu_custom_call.1} parent=1 // pred_region
      %45 = vsyncadd [#allocation6], 0
      %s46 = sshll.u32 %s2, 4
      %s47 = int_to_ptr.hbm [resolvable:$true] %s46
      %s48 = sshll.u32 [#allocation7], 4
      %s49 = int_to_ptr.vmem [resolvable:$true] %s48
      %54 = dma.hbm_to_vmem [thread:$0]  %s47, 4096, %s49, [#allocation6], 128, 128, 8
    $region13: #{tpu_custom_call.1} parent=1 // pred_fallthru
      _
    // Predicated region
    $region14: #{tpu_custom_call.1} parent=1 // pred_check
      _
    $region15: #{tpu_custom_call.1} parent=1 // pred_check_branch
      %56 = sbr.rel (0) target = $region17
    $region16: #{tpu_custom_call.1} parent=1 // pred_region
      %58 = vsyncadd [#allocation9], 0
      %s59 = sshll.u32 %s3, 4
      %s60 = int_to_ptr.hbm [resolvable:$true] %s59
      %s61 = sshll.u32 [#allocation8], 4
      %s62 = int_to_ptr.vmem [resolvable:$true] %s61
      %67 = dma.hbm_to_vmem [thread:$0]  %s60, 2048, %s62, [#allocation9], 128, 128, 8
    $region17: #{tpu_custom_call.1} parent=1 // pred_fallthru
      _
    // Predicated region
    $region18: #{tpu_custom_call.1} parent=1 // pred_check
      _
    $region19: #{tpu_custom_call.1} parent=1 // pred_check_branch
      %69 = sbr.rel (0) target = $region21
    $region20: #{tpu_custom_call.1} parent=1 // pred_region
      _
    $region21: #{tpu_custom_call.1} parent=1 // pred_fallthru
      _
    // Predicated region
    $region22: #{tpu_custom_call.1} parent=1 // pred_check
      _
    $region23: #{tpu_custom_call.1} parent=1 // pred_check_branch
      %71 = sbr.rel (0) target = $region25
    $region24: #{tpu_custom_call.1} parent=1 // pred_region
      %73 = vsyncadd [#allocation9], 0
      %s74 = sshll.u32 %s5, 4
      %s75 = int_to_ptr.hbm [resolvable:$true] %s74
      %s76 = sshll.u32 [#allocation10], 4
      %s77 = int_to_ptr.vmem [resolvable:$true] %s76
      %82 = dma.hbm_to_vmem [thread:$0]  %s75, 2048, %s77, [#allocation9], 128, 128, 8
    $region25: #{tpu_custom_call.1} parent=1 // pred_fallthru
      _
    // Predicated region
    $region26: #{tpu_custom_call.1} parent=1 // pred_check
      _
    $region27: #{tpu_custom_call.1} parent=1 // pred_check_branch
      %84 = sbr.rel (0) target = $region29
    $region28: #{tpu_custom_call.1} parent=1 // pred_region
      _
    $region29: #{tpu_custom_call.1} parent=1 // pred_fallthru
      _
    // Predicated region
    $region30: #{tpu_custom_call.1} parent=1 // pred_check
      _
    $region31: #{tpu_custom_call.1} parent=1 // pred_check_branch
      %86 = sbr.rel (0) target = $region33
    $region32: #{tpu_custom_call.1} parent=1 // pred_region
      %88 = dma.done [#allocation3], 4096
    $region33: #{tpu_custom_call.1} parent=1 // pred_fallthru
      _
    // Predicated region
    $region34: #{tpu_custom_call.1} parent=1 // pred_check
      _
    $region35: #{tpu_custom_call.1} parent=1 // pred_check_branch
      %90 = sbr.rel (0) target = $region37
    $region36: #{tpu_custom_call.1} parent=1 // pred_region
      %92 = dma.done [#allocation6], 2048
    $region37: #{tpu_custom_call.1} parent=1 // pred_fallthru
      _
    // Predicated region
    $region38: #{tpu_custom_call.1} parent=1 // pred_check
      _
    $region39: #{tpu_custom_call.1} parent=1 // pred_check_branch
      %94 = sbr.rel (0) target = $region41
    $region40: #{tpu_custom_call.1} parent=1 // pred_region
      %96 = dma.done [#allocation6], 4096
    $region41: #{tpu_custom_call.1} parent=1 // pred_fallthru
      _
    // Predicated region
    $region42: #{tpu_custom_call.1} parent=1 // pred_check
      _
    $region43: #{tpu_custom_call.1} parent=1 // pred_check_branch
      %98 = sbr.rel (0) target = $region45
    $region44: #{tpu_custom_call.1} parent=1 // pred_region
      %100 = dma.done [#allocation9], 2048
    $region45: #{tpu_custom_call.1} parent=1 // pred_fallthru
      _
    // Predicated region
    $region46: #{tpu_custom_call.1} parent=1 // pred_check
      _
    $region47: #{tpu_custom_call.1} parent=1 // pred_check_branch
      %102 = sbr.rel (0) target = $region49
    $region48: #{tpu_custom_call.1} parent=1 // pred_region
      %104 = dma.done [#allocation9], 2048
    $region49: #{tpu_custom_call.1} parent=1 // pred_fallthru
      _
    %p105 = scmp.eq.s32.totalorder 0, 0
    // Predicated region
    $region50: #{tpu_custom_call.1} parent=1 // pred_check
      %p106 = pneg %p105
    $region51: #{tpu_custom_call.1} parent=1 // pred_check_branch
      %108 = sbr.rel (%p106) target = $region53
    $region52: #{tpu_custom_call.1} parent=1 // pred_region
      %109 = vst [vmem:[#allocation11] sm:$0xff] 0.0
      %110 = vst [vmem:[#allocation11 + $0x8] sm:$0xff] 0.0
      %111 = vst [vmem:[#allocation11 + $0x10] sm:$0xff] 0.0
      %112 = vst [vmem:[#allocation11 + $0x18] sm:$0xff] 0.0
      %113 = vst [vmem:[#allocation11 + $0x20] sm:$0xff] 0.0
      %114 = vst [vmem:[#allocation11 + $0x28] sm:$0xff] 0.0
      %115 = vst [vmem:[#allocation11 + $0x30] sm:$0xff] 0.0
      %116 = vst [vmem:[#allocation11 + $0x38] sm:$0xff] 0.0
      %117 = vst [vmem:[#allocation11 + $0x40] sm:$0xff] 0.0
      %118 = vst [vmem:[#allocation11 + $0x48] sm:$0xff] 0.0
      %119 = vst [vmem:[#allocation11 + $0x50] sm:$0xff] 0.0
      %120 = vst [vmem:[#allocation11 + $0x58] sm:$0xff] 0.0
      %121 = vst [vmem:[#allocation11 + $0x60] sm:$0xff] 0.0
      %122 = vst [vmem:[#allocation11 + $0x68] sm:$0xff] 0.0
      %123 = vst [vmem:[#allocation11 + $0x70] sm:$0xff] 0.0
      %124 = vst [vmem:[#allocation11 + $0x78] sm:$0xff] 0.0
      %125 = vst [vmem:[#allocation11 + $0x80] sm:$0xff] 0.0
      %126 = vst [vmem:[#allocation11 + $0x88] sm:$0xff] 0.0
      %127 = vst [vmem:[#allocation11 + $0x90] sm:$0xff] 0.0
      %128 = vst [vmem:[#allocation11 + $0x98] sm:$0xff] 0.0
      %129 = vst [vmem:[#allocation11 + $0xa0] sm:$0xff] 0.0
      %130 = vst [vmem:[#allocation11 + $0xa8] sm:$0xff] 0.0
      %131 = vst [vmem:[#allocation11 + $0xb0] sm:$0xff] 0.0
      %132 = vst [vmem:[#allocation11 + $0xb8] sm:$0xff] 0.0
      %133 = vst [vmem:[#allocation11 + $0xc0] sm:$0xff] 0.0
      %134 = vst [vmem:[#allocation11 + $0xc8] sm:$0xff] 0.0
      %135 = vst [vmem:[#allocation11 + $0xd0] sm:$0xff] 0.0
      %136 = vst [vmem:[#allocation11 + $0xd8] sm:$0xff] 0.0
      %137 = vst [vmem:[#allocation11 + $0xe0] sm:$0xff] 0.0
      %138 = vst [vmem:[#allocation11 + $0xe8] sm:$0xff] 0.0
      %139 = vst [vmem:[#allocation11 + $0xf0] sm:$0xff] 0.0
      %140 = vst [vmem:[#allocation11 + $0xf8] sm:$0xff] 0.0
    $region53: #{tpu_custom_call.1} parent=1 // pred_fallthru
      _
    %s141 = smul.u32 0, 256
    %s142 = sshra.s32 %s141, 3
    %s143 = sand.u32 %s141, 7
    %s144 = smul.addr %s142, 4
    %s145 = scalar_lea.vmem [#allocation5], %s144
    %v146 = vld [vmem:[%s145] sm:$0xf]
    %v147 = vld [vmem:[%s145 + $0x4] sm:$0xf]
    %v148 = vld [vmem:[%s145 + $0x8] sm:$0xf]
    %v149 = vld [vmem:[%s145 + $0xc] sm:$0xf]
    %v150 = vld [vmem:[%s145 + $0x10] sm:$0xf]
    %v151 = vld [vmem:[%s145 + $0x14] sm:$0xf]
    %v152 = vld [vmem:[%s145 + $0x18] sm:$0xf]
    %v153 = vld [vmem:[%s145 + $0x1c] sm:$0xf]
    %v154 = vld [vmem:[%s145 + $0x20] sm:$0xf]
    %v155 = vld [vmem:[%s145 + $0x24] sm:$0xf]
    %v156 = vld [vmem:[%s145 + $0x28] sm:$0xf]
    %v157 = vld [vmem:[%s145 + $0x2c] sm:$0xf]
    %v158 = vld [vmem:[%s145 + $0x30] sm:$0xf]
    %v159 = vld [vmem:[%s145 + $0x34] sm:$0xf]
    %v160 = vld [vmem:[%s145 + $0x38] sm:$0xf]
    %v161 = vld [vmem:[%s145 + $0x3c] sm:$0xf]
    %v162 = vld [vmem:[%s145 + $0x40] sm:$0xf]
    %v163 = vld [vmem:[%s145 + $0x44] sm:$0xf]
    %v164 = vld [vmem:[%s145 + $0x48] sm:$0xf]
    %v165 = vld [vmem:[%s145 + $0x4c] sm:$0xf]
    %v166 = vld [vmem:[%s145 + $0x50] sm:$0xf]
    %v167 = vld [vmem:[%s145 + $0x54] sm:$0xf]
    %v168 = vld [vmem:[%s145 + $0x58] sm:$0xf]
    %v169 = vld [vmem:[%s145 + $0x5c] sm:$0xf]
    %v170 = vld [vmem:[%s145 + $0x60] sm:$0xf]
    %v171 = vld [vmem:[%s145 + $0x64] sm:$0xf]
    %v172 = vld [vmem:[%s145 + $0x68] sm:$0xf]
    %v173 = vld [vmem:[%s145 + $0x6c] sm:$0xf]
    %v174 = vld [vmem:[%s145 + $0x70] sm:$0xf]
    %v175 = vld [vmem:[%s145 + $0x74] sm:$0xf]
    %v176 = vld [vmem:[%s145 + $0x78] sm:$0xf]
    %v177 = vld [vmem:[%s145 + $0x7c] sm:$0xf]
    %v178 = vld [vmem:[#allocation11] sm:$0xff]
    %v179 = vld [vmem:[#allocation11 + $0x8] sm:$0xff]
    %v180 = vld [vmem:[#allocation11 + $0x10] sm:$0xff]
    %v181 = vld [vmem:[#allocation11 + $0x18] sm:$0xff]
    %v182 = vld [vmem:[#allocation11 + $0x20] sm:$0xff]
    %v183 = vld [vmem:[#allocation11 + $0x28] sm:$0xff]
    %v184 = vld [vmem:[#allocation11 + $0x30] sm:$0xff]
    %v185 = vld [vmem:[#allocation11 + $0x38] sm:$0xff]
    %v186 = vld [vmem:[#allocation11 + $0x40] sm:$0xff]
    %v187 = vld [vmem:[#allocation11 + $0x48] sm:$0xff]
    %v188 = vld [vmem:[#allocation11 + $0x50] sm:$0xff]
    %v189 = vld [vmem:[#allocation11 + $0x58] sm:$0xff]
    %v190 = vld [vmem:[#allocation11 + $0x60] sm:$0xff]
    %v191 = vld [vmem:[#allocation11 + $0x68] sm:$0xff]
    %v192 = vld [vmem:[#allocation11 + $0x70] sm:$0xff]
    %v193 = vld [vmem:[#allocation11 + $0x78] sm:$0xff]
    %v194 = vld [vmem:[#allocation11 + $0x80] sm:$0xff]
    %v195 = vld [vmem:[#allocation11 + $0x88] sm:$0xff]
    %v196 = vld [vmem:[#allocation11 + $0x90] sm:$0xff]
    %v197 = vld [vmem:[#allocation11 + $0x98] sm:$0xff]
    %v198 = vld [vmem:[#allocation11 + $0xa0] sm:$0xff]
    %v199 = vld [vmem:[#allocation11 + $0xa8] sm:$0xff]
    %v200 = vld [vmem:[#allocation11 + $0xb0] sm:$0xff]
    %v201 = vld [vmem:[#allocation11 + $0xb8] sm:$0xff]
    %v202 = vld [vmem:[#allocation11 + $0xc0] sm:$0xff]
    %v203 = vld [vmem:[#allocation11 + $0xc8] sm:$0xff]
    %v204 = vld [vmem:[#allocation11 + $0xd0] sm:$0xff]
    %v205 = vld [vmem:[#allocation11 + $0xd8] sm:$0xff]
    %v206 = vld [vmem:[#allocation11 + $0xe0] sm:$0xff]
    %v207 = vld [vmem:[#allocation11 + $0xe8] sm:$0xff]
    %v208 = vld [vmem:[#allocation11 + $0xf0] sm:$0xff]
    %v209 = vld [vmem:[#allocation11 + $0xf8] sm:$0xff]
    %v210 = vld [vmem:[#allocation2] sm:$0xff]
    %v211 = vld [vmem:[#allocation2 + $0x8] sm:$0xff]
    %v212 = vld [vmem:[#allocation2 + $0x10] sm:$0xff]
    %v213 = vld [vmem:[#allocation2 + $0x18] sm:$0xff]
    %v214 = vld [vmem:[#allocation2 + $0x20] sm:$0xff]
    %v215 = vld [vmem:[#allocation2 + $0x28] sm:$0xff]
    %v216 = vld [vmem:[#allocation2 + $0x30] sm:$0xff]
    %v217 = vld [vmem:[#allocation2 + $0x38] sm:$0xff]
    %v218 = vld [vmem:[#allocation2 + $0x40] sm:$0xff]
    %v219 = vld [vmem:[#allocation2 + $0x48] sm:$0xff]
    %v220 = vld [vmem:[#allocation2 + $0x50] sm:$0xff]
    %v221 = vld [vmem:[#allocation2 + $0x58] sm:$0xff]
    %v222 = vld [vmem:[#allocation2 + $0x60] sm:$0xff]
    %v223 = vld [vmem:[#allocation2 + $0x68] sm:$0xff]
    %v224 = vld [vmem:[#allocation2 + $0x70] sm:$0xff]
    %v225 = vld [vmem:[#allocation2 + $0x78] sm:$0xff]
    %v226 = vld [vmem:[#allocation2 + $0x80] sm:$0xff]
    %v227 = vld [vmem:[#allocation2 + $0x88] sm:$0xff]
    %v228 = vld [vmem:[#allocation2 + $0x90] sm:$0xff]
    %v229 = vld [vmem:[#allocation2 + $0x98] sm:$0xff]
    %v230 = vld [vmem:[#allocation2 + $0xa0] sm:$0xff]
    %v231 = vld [vmem:[#allocation2 + $0xa8] sm:$0xff]
    %v232 = vld [vmem:[#allocation2 + $0xb0] sm:$0xff]
    %v233 = vld [vmem:[#allocation2 + $0xb8] sm:$0xff]
    %v234 = vld [vmem:[#allocation2 + $0xc0] sm:$0xff]
    %v235 = vld [vmem:[#allocation2 + $0xc8] sm:$0xff]
    %v236 = vld [vmem:[#allocation2 + $0xd0] sm:$0xff]
    %v237 = vld [vmem:[#allocation2 + $0xd8] sm:$0xff]
    %v238 = vld [vmem:[#allocation2 + $0xe0] sm:$0xff]
    %v239 = vld [vmem:[#allocation2 + $0xe8] sm:$0xff]
    %v240 = vld [vmem:[#allocation2 + $0xf0] sm:$0xff]
    %v241 = vld [vmem:[#allocation2 + $0xf8] sm:$0xff]
    %v274 = vunpack.c.l.b16 %v210
    %v275 = vunpack.c.h.b16 %v210
    %v276 = vunpack.c.l.b16 %v211
    %v277 = vunpack.c.h.b16 %v211
    %v278 = vunpack.c.l.b16 %v212
    %v279 = vunpack.c.h.b16 %v212
    %v280 = vunpack.c.l.b16 %v213
    %v281 = vunpack.c.h.b16 %v213
    %v282 = vunpack.c.l.b16 %v214
    %v283 = vunpack.c.h.b16 %v214
    %v284 = vunpack.c.l.b16 %v215
    %v285 = vunpack.c.h.b16 %v215
    %v286 = vunpack.c.l.b16 %v216
    %v287 = vunpack.c.h.b16 %v216
    %v288 = vunpack.c.l.b16 %v217
    %v289 = vunpack.c.h.b16 %v217
    %v290 = vunpack.c.l.b16 %v218
    %v291 = vunpack.c.h.b16 %v218
    %v292 = vunpack.c.l.b16 %v219
    %v293 = vunpack.c.h.b16 %v219
    %v294 = vunpack.c.l.b16 %v220
    %v295 = vunpack.c.h.b16 %v220
    %v296 = vunpack.c.l.b16 %v221
    %v297 = vunpack.c.h.b16 %v221
    %v298 = vunpack.c.l.b16 %v222
    %v299 = vunpack.c.h.b16 %v222
    %v300 = vunpack.c.l.b16 %v223
    %v301 = vunpack.c.h.b16 %v223
    %v302 = vunpack.c.l.b16 %v224
    %v303 = vunpack.c.h.b16 %v224
    %v304 = vunpack.c.l.b16 %v225
    %v305 = vunpack.c.h.b16 %v225
    %v306 = vunpack.c.l.b16 %v226
    %v307 = vunpack.c.h.b16 %v226
    %v308 = vunpack.c.l.b16 %v227
    %v309 = vunpack.c.h.b16 %v227
    %v310 = vunpack.c.l.b16 %v228
    %v311 = vunpack.c.h.b16 %v228
    %v312 = vunpack.c.l.b16 %v229
    %v313 = vunpack.c.h.b16 %v229
    %v314 = vunpack.c.l.b16 %v230
    %v315 = vunpack.c.h.b16 %v230
    %v316 = vunpack.c.l.b16 %v231
    %v317 = vunpack.c.h.b16 %v231
    %v318 = vunpack.c.l.b16 %v232
    %v319 = vunpack.c.h.b16 %v232
    %v320 = vunpack.c.l.b16 %v233
    %v321 = vunpack.c.h.b16 %v233
    %v322 = vunpack.c.l.b16 %v234
    %v323 = vunpack.c.h.b16 %v234
    %v324 = vunpack.c.l.b16 %v235
    %v325 = vunpack.c.h.b16 %v235
    %v326 = vunpack.c.l.b16 %v236
    %v327 = vunpack.c.h.b16 %v236
    %v328 = vunpack.c.l.b16 %v237
    %v329 = vunpack.c.h.b16 %v237
    %v330 = vunpack.c.l.b16 %v238
    %v331 = vunpack.c.h.b16 %v238
    %v332 = vunpack.c.l.b16 %v239
    %v333 = vunpack.c.h.b16 %v239
    %v334 = vunpack.c.l.b16 %v240
    %v335 = vunpack.c.h.b16 %v240
    %v336 = vunpack.c.l.b16 %v241
    %v337 = vunpack.c.h.b16 %v241
    %v338 = vpack.c.b16 %v276, %v274
    %v339 = vpack.c.b16 %v277, %v275
    %v340 = vpack.c.b16 %v280, %v278
    %v341 = vpack.c.b16 %v281, %v279
    %v342 = vpack.c.b16 %v284, %v282
    %v343 = vpack.c.b16 %v285, %v283
    %v344 = vpack.c.b16 %v288, %v286
    %v345 = vpack.c.b16 %v289, %v287
    %v346 = vpack.c.b16 %v292, %v290
    %v347 = vpack.c.b16 %v293, %v291
    %v348 = vpack.c.b16 %v296, %v294
    %v349 = vpack.c.b16 %v297, %v295
    %v350 = vpack.c.b16 %v300, %v298
    %v351 = vpack.c.b16 %v301, %v299
    %v352 = vpack.c.b16 %v304, %v302
    %v353 = vpack.c.b16 %v305, %v303
    %v354 = vpack.c.b16 %v308, %v306
    %v355 = vpack.c.b16 %v309, %v307
    %v356 = vpack.c.b16 %v312, %v310
    %v357 = vpack.c.b16 %v313, %v311
    %v358 = vpack.c.b16 %v316, %v314
    %v359 = vpack.c.b16 %v317, %v315
    %v360 = vpack.c.b16 %v320, %v318
    %v361 = vpack.c.b16 %v321, %v319
    %v362 = vpack.c.b16 %v324, %v322
    %v363 = vpack.c.b16 %v325, %v323
    %v364 = vpack.c.b16 %v328, %v326
    %v365 = vpack.c.b16 %v329, %v327
    %v366 = vpack.c.b16 %v332, %v330
    %v367 = vpack.c.b16 %v333, %v331
    %v368 = vpack.c.b16 %v336, %v334
    %v369 = vpack.c.b16 %v337, %v335
    %v434 = vunpack.c.l.b16 %v146
    %v435 = vunpack.c.l.b16 %v147
    %v436 = vunpack.c.l.b16 %v148
    %v437 = vunpack.c.l.b16 %v149
    %v438 = vunpack.c.l.b16 %v150
    %v439 = vunpack.c.l.b16 %v151
    %v440 = vunpack.c.l.b16 %v152
    %v441 = vunpack.c.l.b16 %v153
    %v442 = vunpack.c.l.b16 %v154
    %v443 = vunpack.c.l.b16 %v155
    %v444 = vunpack.c.l.b16 %v156
    %v445 = vunpack.c.l.b16 %v157
    %v446 = vunpack.c.l.b16 %v158
    %v447 = vunpack.c.l.b16 %v159
    %v448 = vunpack.c.l.b16 %v160
    %v449 = vunpack.c.l.b16 %v161
    %v450 = vunpack.c.l.b16 %v162
    %v451 = vunpack.c.l.b16 %v163
    %v452 = vunpack.c.l.b16 %v164
    %v453 = vunpack.c.l.b16 %v165
    %v454 = vunpack.c.l.b16 %v166
    %v455 = vunpack.c.l.b16 %v167
    %v456 = vunpack.c.l.b16 %v168
    %v457 = vunpack.c.l.b16 %v169
    %v458 = vunpack.c.l.b16 %v170
    %v459 = vunpack.c.l.b16 %v171
    %v460 = vunpack.c.l.b16 %v172
    %v461 = vunpack.c.l.b16 %v173
    %v462 = vunpack.c.l.b16 %v174
    %v463 = vunpack.c.l.b16 %v175
    %v464 = vunpack.c.l.b16 %v176
    %v465 = vunpack.c.l.b16 %v177
    %v466 = vpack.c.b16 %v435, %v434
    %v467 = vpack.c.b16 %v437, %v436
    %v468 = vpack.c.b16 %v439, %v438
    %v469 = vpack.c.b16 %v441, %v440
    %v470 = vpack.c.b16 %v443, %v442
    %v471 = vpack.c.b16 %v445, %v444
    %v472 = vpack.c.b16 %v447, %v446
    %v473 = vpack.c.b16 %v449, %v448
    %v474 = vpack.c.b16 %v451, %v450
    %v475 = vpack.c.b16 %v453, %v452
    %v476 = vpack.c.b16 %v455, %v454
    %v477 = vpack.c.b16 %v457, %v456
    %v478 = vpack.c.b16 %v459, %v458
    %v479 = vpack.c.b16 %v461, %v460
    %v480 = vpack.c.b16 %v463, %v462
    %v481 = vpack.c.b16 %v465, %v464
    %498 = vmatpush.bf16.msra.mxu0 %v473
    %499 = vmatpush.bf16.msra.mxu0 %v472
    %500 = vmatpush.bf16.msra.mxu0 %v471
    %501 = vmatpush.bf16.msra.mxu0 %v470
    %502 = vmatpush.bf16.msra.mxu0 %v469
    %503 = vmatpush.bf16.msra.mxu0 %v468
    %504 = vmatpush.bf16.msra.mxu0 %v467
    %505 = vmatpush.bf16.msra.mxu0 %v466
    %506 = vmatmul.bf16.gmra.mxu0 %v338
    %v507 = vpop.f32.mrf.mxu0
    %v508 = vadd.f32 0.0, %v507
    %v509 = vpop.f32.mrf.mxu0
    %v510 = vadd.f32 0.0, %v509
    %511 = vmatmul.bf16.gmra.mxu0 %v340
    %v512 = vpop.f32.mrf.mxu0
    %v513 = vadd.f32 0.0, %v512
    %v514 = vpop.f32.mrf.mxu0
    %v515 = vadd.f32 0.0, %v514
    %516 = vmatmul.bf16.gmra.mxu0 %v342
    %v517 = vpop.f32.mrf.mxu0
    %v518 = vadd.f32 0.0, %v517
    %v519 = vpop.f32.mrf.mxu0
    %v520 = vadd.f32 0.0, %v519
    %521 = vmatmul.bf16.gmra.mxu0 %v344
    %v522 = vpop.f32.mrf.mxu0
    %v523 = vadd.f32 0.0, %v522
    %v524 = vpop.f32.mrf.mxu0
    %v525 = vadd.f32 0.0, %v524
    %526 = vmatmul.bf16.gmra.mxu0 %v346
    %v527 = vpop.f32.mrf.mxu0
    %v528 = vadd.f32 0.0, %v527
    %v529 = vpop.f32.mrf.mxu0
    %v530 = vadd.f32 0.0, %v529
    %531 = vmatmul.bf16.gmra.mxu0 %v348
    %v532 = vpop.f32.mrf.mxu0
    %v533 = vadd.f32 0.0, %v532
    %v534 = vpop.f32.mrf.mxu0
    %v535 = vadd.f32 0.0, %v534
    %536 = vmatmul.bf16.gmra.mxu0 %v350
    %v537 = vpop.f32.mrf.mxu0
    %v538 = vadd.f32 0.0, %v537
    %v539 = vpop.f32.mrf.mxu0
    %v540 = vadd.f32 0.0, %v539
    %541 = vmatmul.bf16.gmra.mxu0 %v352
    %v542 = vpop.f32.mrf.mxu0
    %v543 = vadd.f32 0.0, %v542
    %v544 = vpop.f32.mrf.mxu0
    %v545 = vadd.f32 0.0, %v544
    %546 = vmatmul.bf16.gmra.mxu0 %v354
    %v547 = vpop.f32.mrf.mxu0
    %v548 = vadd.f32 0.0, %v547
    %v549 = vpop.f32.mrf.mxu0
    %v550 = vadd.f32 0.0, %v549
    %551 = vmatmul.bf16.gmra.mxu0 %v356
    %v552 = vpop.f32.mrf.mxu0
    %v553 = vadd.f32 0.0, %v552
    %v554 = vpop.f32.mrf.mxu0
    %v555 = vadd.f32 0.0, %v554
    %556 = vmatmul.bf16.gmra.mxu0 %v358
    %v557 = vpop.f32.mrf.mxu0
    %v558 = vadd.f32 0.0, %v557
    %v559 = vpop.f32.mrf.mxu0
    %v560 = vadd.f32 0.0, %v559
    %561 = vmatmul.bf16.gmra.mxu0 %v360
    %v562 = vpop.f32.mrf.mxu0
    %v563 = vadd.f32 0.0, %v562
    %v564 = vpop.f32.mrf.mxu0
    %v565 = vadd.f32 0.0, %v564
    %566 = vmatmul.bf16.gmra.mxu0 %v362
    %v567 = vpop.f32.mrf.mxu0
    %v568 = vadd.f32 0.0, %v567
    %v569 = vpop.f32.mrf.mxu0
    %v570 = vadd.f32 0.0, %v569
    %571 = vmatmul.bf16.gmra.mxu0 %v364
    %v572 = vpop.f32.mrf.mxu0
    %v573 = vadd.f32 0.0, %v572
    %v574 = vpop.f32.mrf.mxu0
    %v575 = vadd.f32 0.0, %v574
    %576 = vmatmul.bf16.gmra.mxu0 %v366
    %v577 = vpop.f32.mrf.mxu0
    %v578 = vadd.f32 0.0, %v577
    %v579 = vpop.f32.mrf.mxu0
    %v580 = vadd.f32 0.0, %v579
    %581 = vmatmul.bf16.gmra.mxu0 %v368
    %v582 = vpop.f32.mrf.mxu0
    %v583 = vadd.f32 0.0, %v582
    %v584 = vpop.f32.mrf.mxu0
    %v585 = vadd.f32 0.0, %v584
    %586 = vdwg.mxu0
    %587 = vmatpush.bf16.msra.mxu0 %v481
    %588 = vmatpush.bf16.msra.mxu0 %v480
    %589 = vmatpush.bf16.msra.mxu0 %v479
    %590 = vmatpush.bf16.msra.mxu0 %v478
    %591 = vmatpush.bf16.msra.mxu0 %v477
    %592 = vmatpush.bf16.msra.mxu0 %v476
    %593 = vmatpush.bf16.msra.mxu0 %v475
    %594 = vmatpush.bf16.msra.mxu0 %v474
    %595 = vmatmul.bf16.gmra.mxu0 %v339
    %v596 = vpop.f32.mrf.mxu0
    %v597 = vadd.f32 %v508, %v596
    %v598 = vpop.f32.mrf.mxu0
    %v599 = vadd.f32 %v510, %v598
    %600 = vmatmul.bf16.gmra.mxu0 %v341
    %v601 = vpop.f32.mrf.mxu0
    %v602 = vadd.f32 %v513, %v601
    %v603 = vpop.f32.mrf.mxu0
    %v604 = vadd.f32 %v515, %v603
    %605 = vmatmul.bf16.gmra.mxu0 %v343
    %v606 = vpop.f32.mrf.mxu0
    %v607 = vadd.f32 %v518, %v606
    %v608 = vpop.f32.mrf.mxu0
    %v609 = vadd.f32 %v520, %v608
    %610 = vmatmul.bf16.gmra.mxu0 %v345
    %v611 = vpop.f32.mrf.mxu0
    %v612 = vadd.f32 %v523, %v611
    %v613 = vpop.f32.mrf.mxu0
    %v614 = vadd.f32 %v525, %v613
    %615 = vmatmul.bf16.gmra.mxu0 %v347
    %v616 = vpop.f32.mrf.mxu0
    %v617 = vadd.f32 %v528, %v616
    %v618 = vpop.f32.mrf.mxu0
    %v619 = vadd.f32 %v530, %v618
    %620 = vmatmul.bf16.gmra.mxu0 %v349
    %v621 = vpop.f32.mrf.mxu0
    %v622 = vadd.f32 %v533, %v621
    %v623 = vpop.f32.mrf.mxu0
    %v624 = vadd.f32 %v535, %v623
    %625 = vmatmul.bf16.gmra.mxu0 %v351
    %v626 = vpop.f32.mrf.mxu0
    %v627 = vadd.f32 %v538, %v626
    %v628 = vpop.f32.mrf.mxu0
    %v629 = vadd.f32 %v540, %v628
    %630 = vmatmul.bf16.gmra.mxu0 %v353
    %v631 = vpop.f32.mrf.mxu0
    %v632 = vadd.f32 %v543, %v631
    %v633 = vpop.f32.mrf.mxu0
    %v634 = vadd.f32 %v545, %v633
    %635 = vmatmul.bf16.gmra.mxu0 %v355
    %v636 = vpop.f32.mrf.mxu0
    %v637 = vadd.f32 %v548, %v636
    %v638 = vpop.f32.mrf.mxu0
    %v639 = vadd.f32 %v550, %v638
    %640 = vmatmul.bf16.gmra.mxu0 %v357
    %v641 = vpop.f32.mrf.mxu0
    %v642 = vadd.f32 %v553, %v641
    %v643 = vpop.f32.mrf.mxu0
    %v644 = vadd.f32 %v555, %v643
    %645 = vmatmul.bf16.gmra.mxu0 %v359
    %v646 = vpop.f32.mrf.mxu0
    %v647 = vadd.f32 %v558, %v646
    %v648 = vpop.f32.mrf.mxu0
    %v649 = vadd.f32 %v560, %v648
    %650 = vmatmul.bf16.gmra.mxu0 %v361
    %v651 = vpop.f32.mrf.mxu0
    %v652 = vadd.f32 %v563, %v651
    %v653 = vpop.f32.mrf.mxu0
    %v654 = vadd.f32 %v565, %v653
    %655 = vmatmul.bf16.gmra.mxu0 %v363
    %v656 = vpop.f32.mrf.mxu0
    %v657 = vadd.f32 %v568, %v656
    %v658 = vpop.f32.mrf.mxu0
    %v659 = vadd.f32 %v570, %v658
    %660 = vmatmul.bf16.gmra.mxu0 %v365
    %v661 = vpop.f32.mrf.mxu0
    %v662 = vadd.f32 %v573, %v661
    %v663 = vpop.f32.mrf.mxu0
    %v664 = vadd.f32 %v575, %v663
    %665 = vmatmul.bf16.gmra.mxu0 %v367
    %v666 = vpop.f32.mrf.mxu0
    %v667 = vadd.f32 %v578, %v666
    %v668 = vpop.f32.mrf.mxu0
    %v669 = vadd.f32 %v580, %v668
    %670 = vmatmul.bf16.gmra.mxu0 %v369
    %v671 = vpop.f32.mrf.mxu0
    %v672 = vadd.f32 %v583, %v671
    %v673 = vpop.f32.mrf.mxu0
    %v674 = vadd.f32 %v585, %v673
    %675 = vdwg.mxu0
    %v676 = vadd.f32 %v178, %v597
    %v677 = vadd.f32 %v179, %v599
    %v678 = vadd.f32 %v180, %v602
    %v679 = vadd.f32 %v181, %v604
    %v680 = vadd.f32 %v182, %v607
    %v681 = vadd.f32 %v183, %v609
    %v682 = vadd.f32 %v184, %v612
    %v683 = vadd.f32 %v185, %v614
    %v684 = vadd.f32 %v186, %v617
    %v685 = vadd.f32 %v187, %v619
    %v686 = vadd.f32 %v188, %v622
    %v687 = vadd.f32 %v189, %v624
    %v688 = vadd.f32 %v190, %v627
    %v689 = vadd.f32 %v191, %v629
    %v690 = vadd.f32 %v192, %v632
    %v691 = vadd.f32 %v193, %v634
    %v692 = vadd.f32 %v194, %v637
    %v693 = vadd.f32 %v195, %v639
    %v694 = vadd.f32 %v196, %v642
    %v695 = vadd.f32 %v197, %v644
    %v696 = vadd.f32 %v198, %v647
    %v697 = vadd.f32 %v199, %v649
    %v698 = vadd.f32 %v200, %v652
    %v699 = vadd.f32 %v201, %v654
    %v700 = vadd.f32 %v202, %v657
    %v701 = vadd.f32 %v203, %v659
    %v702 = vadd.f32 %v204, %v662
    %v703 = vadd.f32 %v205, %v664
    %v704 = vadd.f32 %v206, %v667
    %v705 = vadd.f32 %v207, %v669
    %v706 = vadd.f32 %v208, %v672
    %v707 = vadd.f32 %v209, %v674
    %708 = vst [vmem:[#allocation11] sm:$0xff] %v676
    %709 = vst [vmem:[#allocation11 + $0x8] sm:$0xff] %v677
    %710 = vst [vmem:[#allocation11 + $0x10] sm:$0xff] %v678
    %711 = vst [vmem:[#allocation11 + $0x18] sm:$0xff] %v679
    %712 = vst [vmem:[#allocation11 + $0x20] sm:$0xff] %v680
    %713 = vst [vmem:[#allocation11 + $0x28] sm:$0xff] %v681
    %714 = vst [vmem:[#allocation11 + $0x30] sm:$0xff] %v682
    %715 = vst [vmem:[#allocation11 + $0x38] sm:$0xff] %v683
    %716 = vst [vmem:[#allocation11 + $0x40] sm:$0xff] %v684
    %717 = vst [vmem:[#allocation11 + $0x48] sm:$0xff] %v685
    %718 = vst [vmem:[#allocation11 + $0x50] sm:$0xff] %v686
    %719 = vst [vmem:[#allocation11 + $0x58] sm:$0xff] %v687
    %720 = vst [vmem:[#allocation11 + $0x60] sm:$0xff] %v688
    %721 = vst [vmem:[#allocation11 + $0x68] sm:$0xff] %v689
    %722 = vst [vmem:[#allocation11 + $0x70] sm:$0xff] %v690
    %723 = vst [vmem:[#allocation11 + $0x78] sm:$0xff] %v691
    %724 = vst [vmem:[#allocation11 + $0x80] sm:$0xff] %v692
    %725 = vst [vmem:[#allocation11 + $0x88] sm:$0xff] %v693
    %726 = vst [vmem:[#allocation11 + $0x90] sm:$0xff] %v694
    %727 = vst [vmem:[#allocation11 + $0x98] sm:$0xff] %v695
    %728 = vst [vmem:[#allocation11 + $0xa0] sm:$0xff] %v696
    %729 = vst [vmem:[#allocation11 + $0xa8] sm:$0xff] %v697
    %730 = vst [vmem:[#allocation11 + $0xb0] sm:$0xff] %v698
    %731 = vst [vmem:[#allocation11 + $0xb8] sm:$0xff] %v699
    %732 = vst [vmem:[#allocation11 + $0xc0] sm:$0xff] %v700
    %733 = vst [vmem:[#allocation11 + $0xc8] sm:$0xff] %v701
    %734 = vst [vmem:[#allocation11 + $0xd0] sm:$0xff] %v702
    %735 = vst [vmem:[#allocation11 + $0xd8] sm:$0xff] %v703
    %736 = vst [vmem:[#allocation11 + $0xe0] sm:$0xff] %v704
    %737 = vst [vmem:[#allocation11 + $0xe8] sm:$0xff] %v705
    %738 = vst [vmem:[#allocation11 + $0xf0] sm:$0xff] %v706
    %739 = vst [vmem:[#allocation11 + $0xf8] sm:$0xff] %v707
    // Predicated region
    $region54: #{tpu_custom_call.1} parent=1 // pred_check
      %p740 = pneg %p105
    $region55: #{tpu_custom_call.1} parent=1 // pred_check_branch
      %742 = sbr.rel (%p740) target = $region57
    $region56: #{tpu_custom_call.1} parent=1 // pred_region
      %v743 = vld [vmem:[#allocation7] sm:$0xff]
      %v744 = vld [vmem:[#allocation7 + $0x8] sm:$0xff]
      %v745 = vld [vmem:[#allocation7 + $0x10] sm:$0xff]
      %v746 = vld [vmem:[#allocation7 + $0x18] sm:$0xff]
      %v747 = vld [vmem:[#allocation7 + $0x20] sm:$0xff]
      %v748 = vld [vmem:[#allocation7 + $0x28] sm:$0xff]
      %v749 = vld [vmem:[#allocation7 + $0x30] sm:$0xff]
      %v750 = vld [vmem:[#allocation7 + $0x38] sm:$0xff]
      %v751 = vld [vmem:[#allocation7 + $0x40] sm:$0xff]
      %v752 = vld [vmem:[#allocation7 + $0x48] sm:$0xff]
      %v753 = vld [vmem:[#allocation7 + $0x50] sm:$0xff]
      %v754 = vld [vmem:[#allocation7 + $0x58] sm:$0xff]
      %v755 = vld [vmem:[#allocation7 + $0x60] sm:$0xff]
      %v756 = vld [vmem:[#allocation7 + $0x68] sm:$0xff]
      %v757 = vld [vmem:[#allocation7 + $0x70] sm:$0xff]
      %v758 = vld [vmem:[#allocation7 + $0x78] sm:$0xff]
      %v759 = vld [vmem:[#allocation7 + $0x80] sm:$0xff]
      %v760 = vld [vmem:[#allocation7 + $0x88] sm:$0xff]
      %v761 = vld [vmem:[#allocation7 + $0x90] sm:$0xff]
      %v762 = vld [vmem:[#allocation7 + $0x98] sm:$0xff]
      %v763 = vld [vmem:[#allocation7 + $0xa0] sm:$0xff]
      %v764 = vld [vmem:[#allocation7 + $0xa8] sm:$0xff]
      %v765 = vld [vmem:[#allocation7 + $0xb0] sm:$0xff]
      %v766 = vld [vmem:[#allocation7 + $0xb8] sm:$0xff]
      %v767 = vld [vmem:[#allocation7 + $0xc0] sm:$0xff]
      %v768 = vld [vmem:[#allocation7 + $0xc8] sm:$0xff]
      %v769 = vld [vmem:[#allocation7 + $0xd0] sm:$0xff]
      %v770 = vld [vmem:[#allocation7 + $0xd8] sm:$0xff]
      %v771 = vld [vmem:[#allocation7 + $0xe0] sm:$0xff]
      %v772 = vld [vmem:[#allocation7 + $0xe8] sm:$0xff]
      %v773 = vld [vmem:[#allocation7 + $0xf0] sm:$0xff]
      %v774 = vld [vmem:[#allocation7 + $0xf8] sm:$0xff]
      %v775 = vld [vmem:[#allocation11] sm:$0xff]
      %v776 = vld [vmem:[#allocation11 + $0x8] sm:$0xff]
      %v777 = vld [vmem:[#allocation11 + $0x10] sm:$0xff]
      %v778 = vld [vmem:[#allocation11 + $0x18] sm:$0xff]
      %v779 = vld [vmem:[#allocation11 + $0x20] sm:$0xff]
      %v780 = vld [vmem:[#allocation11 + $0x28] sm:$0xff]
      %v781 = vld [vmem:[#allocation11 + $0x30] sm:$0xff]
      %v782 = vld [vmem:[#allocation11 + $0x38] sm:$0xff]
      %v783 = vld [vmem:[#allocation11 + $0x40] sm:$0xff]
      %v784 = vld [vmem:[#allocation11 + $0x48] sm:$0xff]
      %v785 = vld [vmem:[#allocation11 + $0x50] sm:$0xff]
      %v786 = vld [vmem:[#allocation11 + $0x58] sm:$0xff]
      %v787 = vld [vmem:[#allocation11 + $0x60] sm:$0xff]
      %v788 = vld [vmem:[#allocation11 + $0x68] sm:$0xff]
      %v789 = vld [vmem:[#allocation11 + $0x70] sm:$0xff]
      %v790 = vld [vmem:[#allocation11 + $0x78] sm:$0xff]
      %v791 = vld [vmem:[#allocation11 + $0x80] sm:$0xff]
      %v792 = vld [vmem:[#allocation11 + $0x88] sm:$0xff]
      %v793 = vld [vmem:[#allocation11 + $0x90] sm:$0xff]
      %v794 = vld [vmem:[#allocation11 + $0x98] sm:$0xff]
      %v795 = vld [vmem:[#allocation11 + $0xa0] sm:$0xff]
      %v796 = vld [vmem:[#allocation11 + $0xa8] sm:$0xff]
      %v797 = vld [vmem:[#allocation11 + $0xb0] sm:$0xff]
      %v798 = vld [vmem:[#allocation11 + $0xb8] sm:$0xff]
      %v799 = vld [vmem:[#allocation11 + $0xc0] sm:$0xff]
      %v800 = vld [vmem:[#allocation11 + $0xc8] sm:$0xff]
      %v801 = vld [vmem:[#allocation11 + $0xd0] sm:$0xff]
      %v802 = vld [vmem:[#allocation11 + $0xd8] sm:$0xff]
      %v803 = vld [vmem:[#allocation11 + $0xe0] sm:$0xff]
      %v804 = vld [vmem:[#allocation11 + $0xe8] sm:$0xff]
      %v805 = vld [vmem:[#allocation11 + $0xf0] sm:$0xff]
      %v806 = vld [vmem:[#allocation11 + $0xf8] sm:$0xff]
      %v807 = vadd.f32 %v743, %v775
      %v808 = vadd.f32 %v744, %v776
      %v809 = vadd.f32 %v745, %v777
      %v810 = vadd.f32 %v746, %v778
      %v811 = vadd.f32 %v747, %v779
      %v812 = vadd.f32 %v748, %v780
      %v813 = vadd.f32 %v749, %v781
      %v814 = vadd.f32 %v750, %v782
      %v815 = vadd.f32 %v751, %v783
      %v816 = vadd.f32 %v752, %v784
      %v817 = vadd.f32 %v753, %v785
      %v818 = vadd.f32 %v754, %v786
      %v819 = vadd.f32 %v755, %v787
      %v820 = vadd.f32 %v756, %v788
      %v821 = vadd.f32 %v757, %v789
      %v822 = vadd.f32 %v758, %v790
      %v823 = vadd.f32 %v759, %v791
      %v824 = vadd.f32 %v760, %v792
      %v825 = vadd.f32 %v761, %v793
      %v826 = vadd.f32 %v762, %v794
      %v827 = vadd.f32 %v763, %v795
      %v828 = vadd.f32 %v764, %v796
      %v829 = vadd.f32 %v765, %v797
      %v830 = vadd.f32 %v766, %v798
      %v831 = vadd.f32 %v767, %v799
      %v832 = vadd.f32 %v768, %v800
      %v833 = vadd.f32 %v769, %v801
      %v834 = vadd.f32 %v770, %v802
      %v835 = vadd.f32 %v771, %v803
      %v836 = vadd.f32 %v772, %v804
      %v837 = vadd.f32 %v773, %v805
      %v838 = vadd.f32 %v774, %v806
      %v839 = vld [vmem:[#allocation8] sm:$0xff]
      %v840 = vld [vmem:[#allocation8 + $0x8] sm:$0xff]
      %v841 = vld [vmem:[#allocation8 + $0x10] sm:$0xff]
      %v842 = vld [vmem:[#allocation8 + $0x18] sm:$0xff]
      %v843 = vld [vmem:[#allocation8 + $0x20] sm:$0xff]
      %v844 = vld [vmem:[#allocation8 + $0x28] sm:$0xff]
      %v845 = vld [vmem:[#allocation8 + $0x30] sm:$0xff]
      %v846 = vld [vmem:[#allocation8 + $0x38] sm:$0xff]
      %v847 = vld [vmem:[#allocation8 + $0x40] sm:$0xff]
      %v848 = vld [vmem:[#allocation8 + $0x48] sm:$0xff]
      %v849 = vld [vmem:[#allocation8 + $0x50] sm:$0xff]
      %v850 = vld [vmem:[#allocation8 + $0x58] sm:$0xff]
      %v851 = vld [vmem:[#allocation8 + $0x60] sm:$0xff]
      %v852 = vld [vmem:[#allocation8 + $0x68] sm:$0xff]
      %v853 = vld [vmem:[#allocation8 + $0x70] sm:$0xff]
      %v854 = vld [vmem:[#allocation8 + $0x78] sm:$0xff]
      %v855 = vld [vmem:[%s4] sm:$0x1]
      %v857 = vperm.slane %v855, 0
      %859 = vmatpush.msra.mxu0 %v854
      %860 = vmatpush.msra.mxu0 %v853
      %861 = vmatpush.msra.mxu0 %v852
      %862 = vmatpush.msra.mxu0 %v851
      %863 = vmatpush.msra.mxu0 %v850
      %864 = vmatpush.msra.mxu0 %v849
      %865 = vmatpush.msra.mxu0 %v848
      %866 = vmatpush.msra.mxu0 %v847
      %867 = vmatpush.msra.mxu0 %v846
      %868 = vmatpush.msra.mxu0 %v845
      %869 = vmatpush.msra.mxu0 %v844
      %870 = vmatpush.msra.mxu0 %v843
      %871 = vmatpush.msra.mxu0 %v842
      %872 = vmatpush.msra.mxu0 %v841
      %873 = vmatpush.msra.mxu0 %v840
      %874 = vmatpush.msra.mxu0 %v839
      %875 = vmatmul.f32.gmra.mxu0 %v807
      %v876 = vpop.f32.mrf.mxu0
      %v877 = vadd.f32 %v857, %v876
      %878 = vmatmul.f32.gmra.mxu0 %v808
      %v879 = vpop.f32.mrf.mxu0
      %v880 = vadd.f32 %v857, %v879
      %881 = vmatmul.f32.gmra.mxu0 %v809
      %v882 = vpop.f32.mrf.mxu0
      %v883 = vadd.f32 %v857, %v882
      %884 = vmatmul.f32.gmra.mxu0 %v810
      %v885 = vpop.f32.mrf.mxu0
      %v886 = vadd.f32 %v857, %v885
      %887 = vmatmul.f32.gmra.mxu0 %v811
      %v888 = vpop.f32.mrf.mxu0
      %v889 = vadd.f32 %v857, %v888
      %890 = vmatmul.f32.gmra.mxu0 %v812
      %v891 = vpop.f32.mrf.mxu0
      %v892 = vadd.f32 %v857, %v891
      %893 = vmatmul.f32.gmra.mxu0 %v813
      %v894 = vpop.f32.mrf.mxu0
      %v895 = vadd.f32 %v857, %v894
      %896 = vmatmul.f32.gmra.mxu0 %v814
      %v897 = vpop.f32.mrf.mxu0
      %v898 = vadd.f32 %v857, %v897
      %899 = vmatmul.f32.gmra.mxu0 %v815
      %v900 = vpop.f32.mrf.mxu0
      %v901 = vadd.f32 %v857, %v900
      %902 = vmatmul.f32.gmra.mxu0 %v816
      %v903 = vpop.f32.mrf.mxu0
      %v904 = vadd.f32 %v857, %v903
      %905 = vmatmul.f32.gmra.mxu0 %v817
      %v906 = vpop.f32.mrf.mxu0
      %v907 = vadd.f32 %v857, %v906
      %908 = vmatmul.f32.gmra.mxu0 %v818
      %v909 = vpop.f32.mrf.mxu0
      %v910 = vadd.f32 %v857, %v909
      %911 = vmatmul.f32.gmra.mxu0 %v819
      %v912 = vpop.f32.mrf.mxu0
      %v913 = vadd.f32 %v857, %v912
      %914 = vmatmul.f32.gmra.mxu0 %v820
      %v915 = vpop.f32.mrf.mxu0
      %v916 = vadd.f32 %v857, %v915
      %917 = vmatmul.f32.gmra.mxu0 %v821
      %v918 = vpop.f32.mrf.mxu0
      %v919 = vadd.f32 %v857, %v918
      %920 = vmatmul.f32.gmra.mxu0 %v822
      %v921 = vpop.f32.mrf.mxu0
      %v922 = vadd.f32 %v857, %v921
      %923 = vmatmul.f32.gmra.mxu0 %v823
      %v924 = vpop.f32.mrf.mxu0
      %v925 = vadd.f32 %v857, %v924
      %926 = vmatmul.f32.gmra.mxu0 %v824
      %v927 = vpop.f32.mrf.mxu0
      %v928 = vadd.f32 %v857, %v927
      %929 = vmatmul.f32.gmra.mxu0 %v825
      %v930 = vpop.f32.mrf.mxu0
      %v931 = vadd.f32 %v857, %v930
      %932 = vmatmul.f32.gmra.mxu0 %v826
      %v933 = vpop.f32.mrf.mxu0
      %v934 = vadd.f32 %v857, %v933
      %935 = vmatmul.f32.gmra.mxu0 %v827
      %v936 = vpop.f32.mrf.mxu0
      %v937 = vadd.f32 %v857, %v936
      %938 = vmatmul.f32.gmra.mxu0 %v828
      %v939 = vpop.f32.mrf.mxu0
      %v940 = vadd.f32 %v857, %v939
      %941 = vmatmul.f32.gmra.mxu0 %v829
      %v942 = vpop.f32.mrf.mxu0
      %v943 = vadd.f32 %v857, %v942
      %944 = vmatmul.f32.gmra.mxu0 %v830
      %v945 = vpop.f32.mrf.mxu0
      %v946 = vadd.f32 %v857, %v945
      %947 = vmatmul.f32.gmra.mxu0 %v831
      %v948 = vpop.f32.mrf.mxu0
      %v949 = vadd.f32 %v857, %v948
      %950 = vmatmul.f32.gmra.mxu0 %v832
      %v951 = vpop.f32.mrf.mxu0
      %v952 = vadd.f32 %v857, %v951
      %953 = vmatmul.f32.gmra.mxu0 %v833
      %v954 = vpop.f32.mrf.mxu0
      %v955 = vadd.f32 %v857, %v954
      %956 = vmatmul.f32.gmra.mxu0 %v834
      %v957 = vpop.f32.mrf.mxu0
      %v958 = vadd.f32 %v857, %v957
      %959 = vmatmul.f32.gmra.mxu0 %v835
      %v960 = vpop.f32.mrf.mxu0
      %v961 = vadd.f32 %v857, %v960
      %962 = vmatmul.f32.gmra.mxu0 %v836
      %v963 = vpop.f32.mrf.mxu0
      %v964 = vadd.f32 %v857, %v963
      %965 = vmatmul.f32.gmra.mxu0 %v837
      %v966 = vpop.f32.mrf.mxu0
      %v967 = vadd.f32 %v857, %v966
      %968 = vmatmul.f32.gmra.mxu0 %v838
      %v969 = vpop.f32.mrf.mxu0
      %v970 = vadd.f32 %v857, %v969
      %971 = vdwg.mxu0
      %v972 = vmax.f32 %v877, 0.0
      %v973 = vmax.f32 %v880, 0.0
      %v974 = vmax.f32 %v883, 0.0
      %v975 = vmax.f32 %v886, 0.0
      %v976 = vmax.f32 %v889, 0.0
      %v977 = vmax.f32 %v892, 0.0
      %v978 = vmax.f32 %v895, 0.0
      %v979 = vmax.f32 %v898, 0.0
      %v980 = vmax.f32 %v901, 0.0
      %v981 = vmax.f32 %v904, 0.0
      %v982 = vmax.f32 %v907, 0.0
      %v983 = vmax.f32 %v910, 0.0
      %v984 = vmax.f32 %v913, 0.0
      %v985 = vmax.f32 %v916, 0.0
      %v986 = vmax.f32 %v919, 0.0
      %v987 = vmax.f32 %v922, 0.0
      %v988 = vmax.f32 %v925, 0.0
      %v989 = vmax.f32 %v928, 0.0
      %v990 = vmax.f32 %v931, 0.0
      %v991 = vmax.f32 %v934, 0.0
      %v992 = vmax.f32 %v937, 0.0
      %v993 = vmax.f32 %v940, 0.0
      %v994 = vmax.f32 %v943, 0.0
      %v995 = vmax.f32 %v946, 0.0
      %v996 = vmax.f32 %v949, 0.0
      %v997 = vmax.f32 %v952, 0.0
      %v998 = vmax.f32 %v955, 0.0
      %v999 = vmax.f32 %v958, 0.0
      %v1000 = vmax.f32 %v961, 0.0
      %v1001 = vmax.f32 %v964, 0.0
      %v1002 = vmax.f32 %v967, 0.0
      %v1003 = vmax.f32 %v970, 0.0
      %v1004 = vld [vmem:[#allocation10] sm:$0xff]
      %v1005 = vld [vmem:[#allocation10 + $0x8] sm:$0xff]
      %v1006 = vld [vmem:[#allocation10 + $0x10] sm:$0xff]
      %v1007 = vld [vmem:[#allocation10 + $0x18] sm:$0xff]
      %v1008 = vld [vmem:[#allocation10 + $0x20] sm:$0xff]
      %v1009 = vld [vmem:[#allocation10 + $0x28] sm:$0xff]
      %v1010 = vld [vmem:[#allocation10 + $0x30] sm:$0xff]
      %v1011 = vld [vmem:[#allocation10 + $0x38] sm:$0xff]
      %v1012 = vld [vmem:[#allocation10 + $0x40] sm:$0xff]
      %v1013 = vld [vmem:[#allocation10 + $0x48] sm:$0xff]
      %v1014 = vld [vmem:[#allocation10 + $0x50] sm:$0xff]
      %v1015 = vld [vmem:[#allocation10 + $0x58] sm:$0xff]
      %v1016 = vld [vmem:[#allocation10 + $0x60] sm:$0xff]
      %v1017 = vld [vmem:[#allocation10 + $0x68] sm:$0xff]
      %v1018 = vld [vmem:[#allocation10 + $0x70] sm:$0xff]
      %v1019 = vld [vmem:[#allocation10 + $0x78] sm:$0xff]
      %v1020 = vld [vmem:[%s6] sm:$0x1]
      %v1022 = vperm.slane %v1020, 0
      %1024 = vmatpush.msra.mxu0 %v1019
      %1025 = vmatpush.msra.mxu0 %v1018
      %1026 = vmatpush.msra.mxu0 %v1017
      %1027 = vmatpush.msra.mxu0 %v1016
      %1028 = vmatpush.msra.mxu0 %v1015
      %1029 = vmatpush.msra.mxu0 %v1014
      %1030 = vmatpush.msra.mxu0 %v1013
      %1031 = vmatpush.msra.mxu0 %v1012
      %1032 = vmatpush.msra.mxu0 %v1011
      %1033 = vmatpush.msra.mxu0 %v1010
      %1034 = vmatpush.msra.mxu0 %v1009
      %1035 = vmatpush.msra.mxu0 %v1008
      %1036 = vmatpush.msra.mxu0 %v1007
      %1037 = vmatpush.msra.mxu0 %v1006
      %1038 = vmatpush.msra.mxu0 %v1005
      %1039 = vmatpush.msra.mxu0 %v1004
      %1040 = vmatmul.f32.gmra.mxu0 %v972
      %v1041 = vpop.f32.mrf.mxu0
      %v1042 = vadd.f32 %v1022, %v1041
      %1043 = vmatmul.f32.gmra.mxu0 %v973
      %v1044 = vpop.f32.mrf.mxu0
      %v1045 = vadd.f32 %v1022, %v1044
      %1046 = vmatmul.f32.gmra.mxu0 %v974
      %v1047 = vpop.f32.mrf.mxu0
      %v1048 = vadd.f32 %v1022, %v1047
      %1049 = vmatmul.f32.gmra.mxu0 %v975
      %v1050 = vpop.f32.mrf.mxu0
      %v1051 = vadd.f32 %v1022, %v1050
      %1052 = vmatmul.f32.gmra.mxu0 %v976
      %v1053 = vpop.f32.mrf.mxu0
      %v1054 = vadd.f32 %v1022, %v1053
      %1055 = vmatmul.f32.gmra.mxu0 %v977
      %v1056 = vpop.f32.mrf.mxu0
      %v1057 = vadd.f32 %v1022, %v1056
      %1058 = vmatmul.f32.gmra.mxu0 %v978
      %v1059 = vpop.f32.mrf.mxu0
      %v1060 = vadd.f32 %v1022, %v1059
      %1061 = vmatmul.f32.gmra.mxu0 %v979
      %v1062 = vpop.f32.mrf.mxu0
      %v1063 = vadd.f32 %v1022, %v1062
      %1064 = vmatmul.f32.gmra.mxu0 %v980
      %v1065 = vpop.f32.mrf.mxu0
      %v1066 = vadd.f32 %v1022, %v1065
      %1067 = vmatmul.f32.gmra.mxu0 %v981
      %v1068 = vpop.f32.mrf.mxu0
      %v1069 = vadd.f32 %v1022, %v1068
      %1070 = vmatmul.f32.gmra.mxu0 %v982
      %v1071 = vpop.f32.mrf.mxu0
      %v1072 = vadd.f32 %v1022, %v1071
      %1073 = vmatmul.f32.gmra.mxu0 %v983
      %v1074 = vpop.f32.mrf.mxu0
      %v1075 = vadd.f32 %v1022, %v1074
      %1076 = vmatmul.f32.gmra.mxu0 %v984
      %v1077 = vpop.f32.mrf.mxu0
      %v1078 = vadd.f32 %v1022, %v1077
      %1079 = vmatmul.f32.gmra.mxu0 %v985
      %v1080 = vpop.f32.mrf.mxu0
      %v1081 = vadd.f32 %v1022, %v1080
      %1082 = vmatmul.f32.gmra.mxu0 %v986
      %v1083 = vpop.f32.mrf.mxu0
      %v1084 = vadd.f32 %v1022, %v1083
      %1085 = vmatmul.f32.gmra.mxu0 %v987
      %v1086 = vpop.f32.mrf.mxu0
      %v1087 = vadd.f32 %v1022, %v1086
      %1088 = vmatmul.f32.gmra.mxu0 %v988
      %v1089 = vpop.f32.mrf.mxu0
      %v1090 = vadd.f32 %v1022, %v1089
      %1091 = vmatmul.f32.gmra.mxu0 %v989
      %v1092 = vpop.f32.mrf.mxu0
      %v1093 = vadd.f32 %v1022, %v1092
      %1094 = vmatmul.f32.gmra.mxu0 %v990
      %v1095 = vpop.f32.mrf.mxu0
      %v1096 = vadd.f32 %v1022, %v1095
      %1097 = vmatmul.f32.gmra.mxu0 %v991
      %v1098 = vpop.f32.mrf.mxu0
      %v1099 = vadd.f32 %v1022, %v1098
      %1100 = vmatmul.f32.gmra.mxu0 %v992
      %v1101 = vpop.f32.mrf.mxu0
      %v1102 = vadd.f32 %v1022, %v1101
      %1103 = vmatmul.f32.gmra.mxu0 %v993
      %v1104 = vpop.f32.mrf.mxu0
      %v1105 = vadd.f32 %v1022, %v1104
      %1106 = vmatmul.f32.gmra.mxu0 %v994
      %v1107 = vpop.f32.mrf.mxu0
      %v1108 = vadd.f32 %v1022, %v1107
      %1109 = vmatmul.f32.gmra.mxu0 %v995
      %v1110 = vpop.f32.mrf.mxu0
      %v1111 = vadd.f32 %v1022, %v1110
      %1112 = vmatmul.f32.gmra.mxu0 %v996
      %v1113 = vpop.f32.mrf.mxu0
      %v1114 = vadd.f32 %v1022, %v1113
      %1115 = vmatmul.f32.gmra.mxu0 %v997
      %v1116 = vpop.f32.mrf.mxu0
      %v1117 = vadd.f32 %v1022, %v1116
      %1118 = vmatmul.f32.gmra.mxu0 %v998
      %v1119 = vpop.f32.mrf.mxu0
      %v1120 = vadd.f32 %v1022, %v1119
      %1121 = vmatmul.f32.gmra.mxu0 %v999
      %v1122 = vpop.f32.mrf.mxu0
      %v1123 = vadd.f32 %v1022, %v1122
      %1124 = vmatmul.f32.gmra.mxu0 %v1000
      %v1125 = vpop.f32.mrf.mxu0
      %v1126 = vadd.f32 %v1022, %v1125
      %1127 = vmatmul.f32.gmra.mxu0 %v1001
      %v1128 = vpop.f32.mrf.mxu0
      %v1129 = vadd.f32 %v1022, %v1128
      %1130 = vmatmul.f32.gmra.mxu0 %v1002
      %v1131 = vpop.f32.mrf.mxu0
      %v1132 = vadd.f32 %v1022, %v1131
      %1133 = vmatmul.f32.gmra.mxu0 %v1003
      %v1134 = vpop.f32.mrf.mxu0
      %v1135 = vadd.f32 %v1022, %v1134
      %1136 = vdwg.mxu0
      %1137 = vst [vmem:[#allocation11] sm:$0xff] %v1042
      %1138 = vst [vmem:[#allocation11 + $0x8] sm:$0xff] %v1045
      %1139 = vst [vmem:[#allocation11 + $0x10] sm:$0xff] %v1048
      %1140 = vst [vmem:[#allocation11 + $0x18] sm:$0xff] %v1051
      %1141 = vst [vmem:[#allocation11 + $0x20] sm:$0xff] %v1054
      %1142 = vst [vmem:[#allocation11 + $0x28] sm:$0xff] %v1057
      %1143 = vst [vmem:[#allocation11 + $0x30] sm:$0xff] %v1060
      %1144 = vst [vmem:[#allocation11 + $0x38] sm:$0xff] %v1063
      %1145 = vst [vmem:[#allocation11 + $0x40] sm:$0xff] %v1066
      %1146 = vst [vmem:[#allocation11 + $0x48] sm:$0xff] %v1069
      %1147 = vst [vmem:[#allocation11 + $0x50] sm:$0xff] %v1072
      %1148 = vst [vmem:[#allocation11 + $0x58] sm:$0xff] %v1075
      %1149 = vst [vmem:[#allocation11 + $0x60] sm:$0xff] %v1078
      %1150 = vst [vmem:[#allocation11 + $0x68] sm:$0xff] %v1081
      %1151 = vst [vmem:[#allocation11 + $0x70] sm:$0xff] %v1084
      %1152 = vst [vmem:[#allocation11 + $0x78] sm:$0xff] %v1087
      %1153 = vst [vmem:[#allocation11 + $0x80] sm:$0xff] %v1090
      %1154 = vst [vmem:[#allocation11 + $0x88] sm:$0xff] %v1093
      %1155 = vst [vmem:[#allocation11 + $0x90] sm:$0xff] %v1096
      %1156 = vst [vmem:[#allocation11 + $0x98] sm:$0xff] %v1099
      %1157 = vst [vmem:[#allocation11 + $0xa0] sm:$0xff] %v1102
      %1158 = vst [vmem:[#allocation11 + $0xa8] sm:$0xff] %v1105
      %1159 = vst [vmem:[#allocation11 + $0xb0] sm:$0xff] %v1108
      %1160 = vst [vmem:[#allocation11 + $0xb8] sm:$0xff] %v1111
      %1161 = vst [vmem:[#allocation11 + $0xc0] sm:$0xff] %v1114
      %1162 = vst [vmem:[#allocation11 + $0xc8] sm:$0xff] %v1117
      %1163 = vst [vmem:[#allocation11 + $0xd0] sm:$0xff] %v1120
      %1164 = vst [vmem:[#allocation11 + $0xd8] sm:$0xff] %v1123
      %1165 = vst [vmem:[#allocation11 + $0xe0] sm:$0xff] %v1126
      %1166 = vst [vmem:[#allocation11 + $0xe8] sm:$0xff] %v1129
      %1167 = vst [vmem:[#allocation11 + $0xf0] sm:$0xff] %v1132
      %1168 = vst [vmem:[#allocation11 + $0xf8] sm:$0xff] %v1135
    $region57: #{tpu_custom_call.1} parent=1 // pred_fallthru
      _
    // Predicated region
    $region58: #{tpu_custom_call.1} parent=1 // pred_check
      _
    $region59: #{tpu_custom_call.1} parent=1 // pred_check_branch
      %1170 = sbr.rel (0) target = $region61
    $region60: #{tpu_custom_call.1} parent=1 // pred_region
      %1172 = vsyncadd [#allocation4], 0
      %s1173 = sshll.u32 [#allocation11], 4
      %s1174 = int_to_ptr.vmem [resolvable:$true] %s1173
      %s1175 = sshll.u32 %s7, 4
      %s1176 = int_to_ptr.hbm [resolvable:$true] %s1175
      %1181 = dma.vmem_to_hbm [thread:$0]  %s1174, 4096, %s1176, [#allocation4], 128, 128, 8
    $region61: #{tpu_custom_call.1} parent=1 // pred_fallthru
      _
    // Predicated region
    $region62: #{tpu_custom_call.1} parent=1 // pred_check
      _
    $region63: #{tpu_custom_call.1} parent=1 // pred_check_branch
      %1183 = sbr.rel (0) target = $region65
    $region64: #{tpu_custom_call.1} parent=1 // pred_region
      %1185 = dma.done [#allocation4], 4096
    $region65: #{tpu_custom_call.1} parent=1 // pred_fallthru
      _
    %1186 = vsyncpa [#allocation3], 1
    %1187 = vsyncpa [#allocation6], 1
    %1188 = vsyncpa [#allocation9], 1
    %1189 = vsyncpa [#allocation4], 1

</llo_original>
